<compile_context>
chip_gen: v7x
topology: tpu7x:2x2x1
jax: 0.10.0
libtpu: 0.0.40
codegen_flags: <defaults>
</compile_context>

<pallas_src>
import jax
import jax.numpy as jnp
from jax import lax
from jax.experimental import pallas as pl
from jax.experimental.pallas import tpu as pltpu


def _parabola_kernel(x_ref, z_ref, wt_ref, bias_ref, y_ref):
    # coeffs^T (3, TB) = W^T (3, Z) . z_tile (TB, Z)^T, contracted over Z on the MXU with
    # f32 accumulation (same contraction pattern as q @ k^T). Batch lands on lanes.
    coeffs_t = lax.dot_general(
        wt_ref[...], z_ref[...],
        dimension_numbers=(((1,), (1,)), ((), ())),
        preferred_element_type=jnp.float32,
    )
    # a / b / c are cheap sublane slices of (3, TB); bias added as SMEM scalar broadcasts.
    a = coeffs_t[0:1, :] + bias_ref[0]          # (1, TB)
    b = coeffs_t[1:2, :] + bias_ref[1]
    c = coeffs_t[2:3, :] + bias_ref[2]
    x = x_ref[...]                              # (1, TB), f32, lane-dense
    y_ref[...] = (a * x + b) * x + c            # Horner; lane-dense unmasked stores


def _round_up(n, m):
    return ((n + m - 1) // m) * m


def parabola_layer(x, z, w_stacked, bias_stacked, *, tb=8192):
    """x: (B, 1) f32, z: (B, Z) f32, w_stacked: (Z, 3), bias_stacked: (1, 3) -> y: (B, 1) f32."""
    if x.ndim != 2:
        raise AttributeError(f"x must have 2 axes, now {x.ndim}")
    if x.shape[-1] != 1:
        raise AttributeError(f"x must have 1 dimension, now {x.shape[-1]}")
    B, Z = z.shape
    assert x.shape[0] == B, "x and z must share the batch dimension"

    # ---- Tile selection: biggest tile (long contiguous z DMAs, few grid steps), but keep
    # >= 2 tiles when the batch is big enough so v7x's second TensorCore gets work. Either
    # the tile equals the full batch (always a legal block), or it is a multiple of 128 and
    # Pallas masks the partial last block -- z is never padded or copied.
    n_tiles = max(pl.cdiv(B, tb), 1)
    if n_tiles == 1 and B >= 1024:
        n_tiles = 2
    if n_tiles > 1:
        tb_eff = _round_up(pl.cdiv(B, n_tiles), 128)
        if tb_eff >= B:
            tb_eff, n_tiles = B, 1
        else:
            n_tiles = pl.cdiv(B, tb_eff)
    else:
        tb_eff = B

    # Layout plumbing only: free metadata reshapes / tiny arrays. z stays in native layout.
    xt = x.reshape(1, B).astype(jnp.float32)                # (1, B), lane-dense
    wt = w_stacked.T.astype(jnp.float32)                    # (3, Z), tiny, VMEM-resident
    bias = bias_stacked.reshape(3).astype(jnp.float32)      # (3,) -> SMEM scalars
    z = z.astype(jnp.float32)

    cost = pl.CostEstimate(
        flops=2 * B * Z * 3 + 7 * B,
        transcendentals=0,
        bytes_accessed=B * Z * 4 + 2 * B * 4 + Z * 3 * 4 + 3 * 4,
    )

    yt = pl.pallas_call(
        _parabola_kernel,
        out_shape=jax.ShapeDtypeStruct((1, B), jnp.float32),
        grid=(n_tiles,),
        in_specs=[
            pl.BlockSpec((1, tb_eff), lambda i: (0, i)),          # x tile, lane-dense
            pl.BlockSpec((tb_eff, Z), lambda i: (i, 0)),          # z tile, contiguous DMA
            pl.BlockSpec((3, Z), lambda i: (0, 0)),               # W^T, resident
            pl.BlockSpec(memory_space=pltpu.MemorySpace.SMEM),    # bias scalars
        ],
        out_specs=pl.BlockSpec((1, tb_eff), lambda i: (0, i)),    # lane-dense y stores
        compiler_params=pltpu.CompilerParams(
            dimension_semantics=("parallel",),       # shard batch tiles over v7x's 2 TCs
            vmem_limit_bytes=32 * 1024 * 1024,
        ),
        cost_estimate=cost,
    )(xt, z, wt, bias)

    return yt.reshape(B, 1)


if __name__ == "__main__":
    Z = 32  # z_size (function-representation size)

    key = jax.random.PRNGKey(0)
    kw, kb = jax.random.split(key, 2)

    # PyTorch-style Linear init bound for the fused a/b/c weights.
    bound = 1.0 / (Z ** 0.5)
    w_stacked = jax.random.uniform(kw, (Z, 3), jnp.float32, -bound, bound)
    bias_stacked = jax.random.uniform(kb, (1, 3), jnp.float32, -bound, bound)

    def reference(x, z, w, b):
        coeffs = jnp.dot(z, w, precision=lax.Precision.HIGHEST) + b     # (B, 3), f32
        return coeffs[:, 0:1] * x ** 2 + coeffs[:, 1:2] * x + coeffs[:, 2:3]

    # B=2048: two even 1024-wide tiles (exercises the pipelined, parallel grid).
    # B=1300: ragged batch -> exercises the no-pad partial-last-block path.
    for B in (2048, 1300):
        kx_b, kz_b = jax.random.split(jax.random.fold_in(key, B))
        x = jax.random.normal(kx_b, (B, 1), dtype=jnp.float32)
        z = jax.random.normal(kz_b, (B, Z), dtype=jnp.float32)

        y = parabola_layer(x, z, w_stacked, bias_stacked)
        jax.block_until_ready(y)
        assert y.shape == (B, 1)

        y_ref = reference(x, z, w_stacked, bias_stacked)
        err = jnp.max(jnp.abs(y - y_ref))
        assert jnp.allclose(y, y_ref, atol=1e-3, rtol=1e-3), f"B={B}: max abs err {err}"

    print("KERNEL_OK")
</pallas_src>

<mosaic_0001>
module attributes {stable_mosaic.version = 11 : i64} {
  func.func @_parabola_kernel(%arg0: i32, %arg1: memref<1x1024xf32, #tpu.memory_space<vmem>>, %arg2: memref<1024x32xf32, #tpu.memory_space<vmem>>, %arg3: memref<3x32xf32, #tpu.memory_space<vmem>>, %arg4: memref<3xf32, #tpu.memory_space<smem>>, %arg5: memref<1x1024xf32, #tpu.memory_space<vmem>>) attributes {dimension_semantics = [#tpu.dimension_semantics<parallel>], iteration_bounds = array<i64: 2>, scalar_prefetch = 0 : i64, scratch_operands = 0 : i64, tpu.core_type = #tpu.core_type<tc>, window_params = [{transform_indices = @transform_0, window_bounds = array<i64: 1, 1024>}, {transform_indices = @transform_1, window_bounds = array<i64: 1024, 32>}, {pipeline_mode = #tpu.pipeline_mode<synchronous>, transform_indices = @transform_2, window_bounds = array<i64: 3, 32>}, {transform_indices = @transform_3, window_bounds = array<i64: 3>}, {transform_indices = @transform_4, window_bounds = array<i64: 1, 1024>}]} {
    %c0 = arith.constant 0 : index
    %c0_0 = arith.constant 0 : index
    %0 = vector.load %arg3[%c0, %c0_0] : memref<3x32xf32, #tpu.memory_space<vmem>>, vector<3x32xf32>
    %c0_1 = arith.constant 0 : index
    %c0_2 = arith.constant 0 : index
    %1 = vector.load %arg2[%c0_1, %c0_2] : memref<1024x32xf32, #tpu.memory_space<vmem>>, vector<1024x32xf32>
    %cst = arith.constant dense<0.000000e+00> : vector<3x1024xf32>
    %2 = tpu.matmul %0, %1, %cst {dimension_numbers = #tpu.dot_dimension_numbers<[1], [1], [0], [0], [0, 0, 1, 0], [], []>} : vector<3x32xf32>, vector<1024x32xf32>, vector<3x1024xf32> -> vector<3x1024xf32>
    %3 = vector.extract_strided_slice %2 {offsets = [0, 0], sizes = [1, 1024], strides = [1, 1]} : vector<3x1024xf32> to vector<1x1024xf32>
    %c0_3 = arith.constant 0 : index
    %4 = memref.load %arg4[%c0_3] : memref<3xf32, #tpu.memory_space<smem>>
    %5 = vector.broadcast %4 : f32 to vector<1x1024xf32>
    %6 = arith.addf %3, %5 : vector<1x1024xf32>
    %7 = vector.extract_strided_slice %2 {offsets = [1, 0], sizes = [1, 1024], strides = [1, 1]} : vector<3x1024xf32> to vector<1x1024xf32>
    %c1 = arith.constant 1 : index
    %8 = memref.load %arg4[%c1] : memref<3xf32, #tpu.memory_space<smem>>
    %9 = vector.broadcast %8 : f32 to vector<1x1024xf32>
    %10 = arith.addf %7, %9 : vector<1x1024xf32>
    %11 = vector.extract_strided_slice %2 {offsets = [2, 0], sizes = [1, 1024], strides = [1, 1]} : vector<3x1024xf32> to vector<1x1024xf32>
    %c2 = arith.constant 2 : index
    %12 = memref.load %arg4[%c2] : memref<3xf32, #tpu.memory_space<smem>>
    %13 = vector.broadcast %12 : f32 to vector<1x1024xf32>
    %14 = arith.addf %11, %13 : vector<1x1024xf32>
    %c0_4 = arith.constant 0 : index
    %c0_5 = arith.constant 0 : index
    %15 = vector.load %arg1[%c0_4, %c0_5] : memref<1x1024xf32, #tpu.memory_space<vmem>>, vector<1x1024xf32>
    %16 = arith.mulf %6, %15 : vector<1x1024xf32>
    %17 = arith.addf %16, %10 : vector<1x1024xf32>
    %18 = arith.mulf %17, %15 : vector<1x1024xf32>
    %19 = arith.addf %18, %14 : vector<1x1024xf32>
    %c0_6 = arith.constant 0 : index
    %c0_7 = arith.constant 0 : index
    %20 = vector.load %arg5[%c0_6, %c0_7] : memref<1x1024xf32, #tpu.memory_space<vmem>>, vector<1x1024xf32>
    tpu.vector_store %arg5[%c0_6, %c0_7], %19 {strides = array<i32>} : memref<1x1024xf32, #tpu.memory_space<vmem>>, vector<1x1024xf32>,
    return
  }
  func.func @transform_0(%arg0: i32) -> (i32, i32) {
    %c0_i32 = arith.constant 0 : i32
    %c0_i32_0 = arith.constant 0 : i32
    return %c0_i32, %arg0 : i32, i32
  }
  func.func @transform_1(%arg0: i32) -> (i32, i32) {
    %c0_i32 = arith.constant 0 : i32
    %c0_i32_0 = arith.constant 0 : i32
    return %arg0, %c0_i32 : i32, i32
  }
  func.func @transform_2(%arg0: i32) -> (i32, i32) {
    %c0_i32 = arith.constant 0 : i32
    %c0_i32_0 = arith.constant 0 : i32
    %c0_i32_1 = arith.constant 0 : i32
    return %c0_i32, %c0_i32_0 : i32, i32
  }
  func.func @transform_3(%arg0: i32) -> i32 {
    %c0_i32 = arith.constant 0 : i32
    %c0_i32_0 = arith.constant 0 : i32
    return %c0_i32 : i32
  }
  func.func @transform_4(%arg0: i32) -> (i32, i32) {
    %c0_i32 = arith.constant 0 : i32
    %c0_i32_0 = arith.constant 0 : i32
    return %c0_i32, %arg0 : i32, i32
  }
}

</mosaic_0001>

<llo_original>
// kernel: tpu_custom_call.1
$region0: #{tpu_custom_call.1}
  #allocation0 [shape = 'u32[]', space=smem, size = 0x4, offset = 0x4, fixed_abs, tag = 'smem constant byte address 0x4 - core index']
  #allocation1 [shape = 'u32[144,128]{1,0:T(1,128)}', space=vmem, size = 0x12000, scoped, tag = 'internal scratch']
  %s0 = inlined_call_operand.vmem [shape: f32[1,2048], index: 0, kind: input, shape index: {}]
  %s1 = inlined_call_operand.vmem [shape: f32[2048,32], index: 1, kind: input, shape index: {}]
  %s2 = inlined_call_operand.vmem [shape: f32[3,32], index: 2, kind: input, shape index: {}]
  %s3 = inlined_call_operand.vmem [shape: f32[3], index: 3, kind: input, shape index: {}]
  %s4 = inlined_call_operand.hbm [shape: f32[1,2048], index: 4, kind: output, shape index: {}]
  %s5 = sld [smem:[#allocation0]]
  $region53: #{tpu_custom_call.1} parent=0
    _
  %s7 = ssub.s32 1, %s5
  %s8 = scalar_select 0, %s7, %s5
  $region1: #{tpu_custom_call.1} parent=0
    #allocation2 [shape = 'u8[512]{0}', space=smem, size = 0x200, scoped, tag = 'input window, operand 3, single buffered']
    #allocation3 [shape = 's32[2]{0}', space=sflag, size = 0x8, scoped, tag = 'scoped memory for tpu_custom_call.1']
    #allocation4 [shape = 's32[2]{0}', space=sflag, size = 0x8, scoped, tag = 'scoped memory for tpu_custom_call.1']
    #allocation5 [shape = 'u8[8192]{0}', space=vmem, size = 0x2000, scoped, tag = 'output window, operand 0']
    %9 = vsyncpa [#allocation4], 0
    %10 = vsyncpa [#allocation3], 0
    %s11 = scalar_lea.sflag [#allocation3], 1
    %12 = vsyncpa %s11, 0
    loop: start=0, step=1, limit=4
    $region2: #{tpu_custom_call.1} parent=1 // loop_pre_header
      _
    $region3: #{tpu_custom_call.1} parent=1 // loop_header
      %s14 = sphi 0, %s18
      %p15 = scmp.ge.s32.totalorder %s14, 4
      %s24 = sphi 0, %s26
      %s27 = sphi 0, %s24
      %s28 = sphi 0, %s27
      %s44 = sphi 0, %s28
      %s50 = sphi 0, %s52
      %s53 = sphi 0, %s50
      %s54 = sphi 0, %s53
      %s70 = sphi 0, %s54
      %s74 = sphi 0, %s74
      %s76 = sphi 0, %s74
      %s77 = sphi 0, %s76
      %s91 = sphi 0, %s77
      %s95 = sphi 0, %s95
      %s97 = sphi 0, %s95
      %s98 = sphi 0, %s97
      %s112 = sphi 0, %s98
      %s118 = sphi 0, %s120
      %s121 = sphi 0, %s118
      %s122 = sphi 0, %s121
      %s138 = sphi 0, %s122
    $region4: #{tpu_custom_call.1} parent=1 // loop_header_branch
      %17 = sbr.rel (%p15) target = $region8
    $region5: #{tpu_custom_call.1} parent=1 // loop_body
      %s19 = ssub.s32 %s14, 1
      %s20 = ssub.s32 %s14, 2
      %s21 = sadd.s32 %s14, 1
      %s22 = ssub.s32 %s14, %s21
      %p23 = scmp.eq.s32.totalorder %s22, 0
      %s25 = sadd.s32 %s24, 1
      %s26 = scalar_select %p23, %s24, %s25
      %p29 = pneg %p23
      %p30 = scmp.eq.s32.totalorder %s14, 1
      %p31 = por %p29, %p30
      %p32 = scmp.ne.s32.totalorder %s24, %s27
      %p33 = scmp.eq.s32.totalorder %s14, 0
      %p34 = por %p32, %p33
      %p35 = scmp.ne.s32.totalorder %s24, %s27
      %p36 = scmp.eq.s32.totalorder %s19, 1
      %p37 = por %p35, %p36
      %p38 = scmp.ne.s32.totalorder %s27, %s28
      %p39 = scmp.eq.s32.totalorder %s19, 0
      %p40 = por %p38, %p39
      %p41 = scmp.ne.s32.totalorder %s27, %s28
      %p42 = scmp.eq.s32.totalorder %s20, 1
      %p43 = por %p41, %p42
      %p45 = scmp.ne.s32.totalorder %s28, %s44
      %p46 = scmp.eq.s32.totalorder %s20, 0
      %p47 = por %p45, %p46
      %s48 = ssub.s32 %s14, %s21
      %p49 = scmp.eq.s32.totalorder %s48, 0
      %s51 = sadd.s32 %s50, 1
      %s52 = scalar_select %p49, %s50, %s51
      %p55 = pneg %p49
      %p56 = scmp.eq.s32.totalorder %s14, 1
      %p57 = por %p55, %p56
      %p58 = scmp.ne.s32.totalorder %s50, %s53
      %p59 = scmp.eq.s32.totalorder %s14, 0
      %p60 = por %p58, %p59
      %p61 = scmp.ne.s32.totalorder %s50, %s53
      %p62 = scmp.eq.s32.totalorder %s19, 1
      %p63 = por %p61, %p62
      %p64 = scmp.ne.s32.totalorder %s53, %s54
      %p65 = scmp.eq.s32.totalorder %s19, 0
      %p66 = por %p64, %p65
      %p67 = scmp.ne.s32.totalorder %s53, %s54
      %p68 = scmp.eq.s32.totalorder %s20, 1
      %p69 = por %p67, %p68
      %p71 = scmp.ne.s32.totalorder %s54, %s70
      %p72 = scmp.eq.s32.totalorder %s20, 0
      %p73 = por %p71, %p72
      %s75 = sadd.s32 %s74, 1
      %p78 = scmp.eq.s32.totalorder %s14, 1
      %p79 = scmp.ne.s32.totalorder %s74, %s76
      %p80 = scmp.eq.s32.totalorder %s14, 0
      %p81 = por %p79, %p80
      %p82 = scmp.ne.s32.totalorder %s74, %s76
      %p83 = scmp.eq.s32.totalorder %s19, 1
      %p84 = por %p82, %p83
      %p85 = scmp.ne.s32.totalorder %s76, %s77
      %p86 = scmp.eq.s32.totalorder %s19, 0
      %p87 = por %p85, %p86
      %p88 = scmp.ne.s32.totalorder %s76, %s77
      %p89 = scmp.eq.s32.totalorder %s20, 1
      %p90 = por %p88, %p89
      %p92 = scmp.ne.s32.totalorder %s77, %s91
      %p93 = scmp.eq.s32.totalorder %s20, 0
      %p94 = por %p92, %p93
      %s96 = sadd.s32 %s95, 1
      %p99 = scmp.eq.s32.totalorder %s14, 1
      %p100 = scmp.ne.s32.totalorder %s95, %s97
      %p101 = scmp.eq.s32.totalorder %s14, 0
      %p102 = por %p100, %p101
      %p103 = scmp.ne.s32.totalorder %s95, %s97
      %p104 = scmp.eq.s32.totalorder %s19, 1
      %p105 = por %p103, %p104
      %p106 = scmp.ne.s32.totalorder %s97, %s98
      %p107 = scmp.eq.s32.totalorder %s19, 0
      %p108 = por %p106, %p107
      %p109 = scmp.ne.s32.totalorder %s97, %s98
      %p110 = scmp.eq.s32.totalorder %s20, 1
      %p111 = por %p109, %p110
      %p113 = scmp.ne.s32.totalorder %s98, %s112
      %p114 = scmp.eq.s32.totalorder %s20, 0
      %p115 = por %p113, %p114
      %s116 = ssub.s32 %s14, %s21
      %p117 = scmp.eq.s32.totalorder %s116, 0
      %s119 = sadd.s32 %s118, 1
      %s120 = scalar_select %p117, %s118, %s119
      %p123 = pneg %p117
      %p124 = scmp.eq.s32.totalorder %s14, 1
      %p125 = por %p123, %p124
      %p126 = scmp.ne.s32.totalorder %s118, %s121
      %p127 = scmp.eq.s32.totalorder %s14, 0
      %p128 = por %p126, %p127
      %p129 = scmp.ne.s32.totalorder %s118, %s121
      %p130 = scmp.eq.s32.totalorder %s19, 1
      %p131 = por %p129, %p130
      %p132 = scmp.ne.s32.totalorder %s121, %s122
      %p133 = scmp.eq.s32.totalorder %s19, 0
      %p134 = por %p132, %p133
      %p135 = scmp.ne.s32.totalorder %s121, %s122
      %p136 = scmp.eq.s32.totalorder %s20, 1
      %p137 = por %p135, %p136
      %p139 = scmp.ne.s32.totalorder %s122, %s138
      %p140 = scmp.eq.s32.totalorder %s20, 0
      %p141 = por %p139, %p140
      %p142 = scmp.le.s32.totalorder 1, %s14
      %p143 = scmp.lt.s32.totalorder %s14, 3
      %p144 = pnand %p142, %p143
      %p145 = pneg %p144
      // Predicated region
      $region9: #{tpu_custom_call.1} parent=5 // pred_check
        _
      $region10: #{tpu_custom_call.1} parent=5 // pred_check_branch
        %147 = sbr.rel (%p144) target = $region12
      $region11: #{tpu_custom_call.1} parent=5 // pred_region
        %s148 = ssub.s32 %s14, 1
        // Predicated region
        $region13: #{tpu_custom_call.1} parent=11 // pred_check
          %p149 = pneg %p87
        $region14: #{tpu_custom_call.1} parent=11 // pred_check_branch
          %151 = sbr.rel (%p149) target = $region16
        $region15: #{tpu_custom_call.1} parent=11 // pred_region
          _
        $region16: #{tpu_custom_call.1} parent=11 // pred_fallthru
          _
        // Predicated region
        $region17: #{tpu_custom_call.1} parent=11 // pred_check
          %p152 = pneg %p108
        $region18: #{tpu_custom_call.1} parent=11 // pred_check_branch
          %154 = sbr.rel (%p152) target = $region20
        $region19: #{tpu_custom_call.1} parent=11 // pred_region
          %s156 = ssub.s32 16, 16
          %157 = vsyncadd [#allocation4], %s156
          %s159 = sshll.u32 %s3, 4
          %s160 = int_to_ptr.vmem [resolvable:$true] %s159
          %162 = dma.vmem_to_smem %s160, 16, [#allocation2], [#allocation4]
        $region20: #{tpu_custom_call.1} parent=11 // pred_fallthru
          _
      $region12: #{tpu_custom_call.1} parent=5 // pred_fallthru
        _
      %p163 = scmp.lt.s32.totalorder %s14, 2
      // Predicated region
      $region21: #{tpu_custom_call.1} parent=5 // pred_check
        %p164 = pneg %p163
      $region22: #{tpu_custom_call.1} parent=5 // pred_check_branch
        %166 = sbr.rel (%p164) target = $region24
      $region23: #{tpu_custom_call.1} parent=5 // pred_region
        // Predicated region
        $region25: #{tpu_custom_call.1} parent=23 // pred_check
          %p167 = pneg %p34
        $region26: #{tpu_custom_call.1} parent=23 // pred_check_branch
          %169 = sbr.rel (%p167) target = $region28
        $region27: #{tpu_custom_call.1} parent=23 // pred_region
          %s170 = smul.u32 8, %s14
          %p171 = scmp.lt.s32.totalorder %s170, 15
          %s172 = scalar_select %p171, %s170, 15
          %s173 = scalar_lea.vmem %s0, %s172
          %s174 = smul.u32 8, %s14
        $region28: #{tpu_custom_call.1} parent=23 // pred_fallthru
          _
        // Predicated region
        $region29: #{tpu_custom_call.1} parent=23 // pred_check
          %p175 = pneg %p60
        $region30: #{tpu_custom_call.1} parent=23 // pred_check_branch
          %177 = sbr.rel (%p175) target = $region32
        $region31: #{tpu_custom_call.1} parent=23 // pred_region
          %s178 = smul.u32 128, %s14
          %p179 = scmp.lt.s32.totalorder %s178, 255
          %s180 = scalar_select %p179, %s178, 255
          %s181 = smul.addr %s180, 8
          %s182 = scalar_lea.vmem %s1, %s181
          %s183 = smul.u32 128, %s14
        $region32: #{tpu_custom_call.1} parent=23 // pred_fallthru
          _
      $region24: #{tpu_custom_call.1} parent=5 // pred_fallthru
        _
      %p184 = scmp.le.s32.totalorder 1, %s14
      %p185 = scmp.lt.s32.totalorder %s14, 3
      %p186 = pnand %p184, %p185
      %p187 = pneg %p186
      // Predicated region
      $region33: #{tpu_custom_call.1} parent=5 // pred_check
        _
      $region34: #{tpu_custom_call.1} parent=5 // pred_check_branch
        %189 = sbr.rel (%p186) target = $region36
      $region35: #{tpu_custom_call.1} parent=5 // pred_region
        %s190 = ssub.s32 %s14, 1
        // Predicated region
        $region37: #{tpu_custom_call.1} parent=35 // pred_check
          %p191 = pneg %p108
        $region38: #{tpu_custom_call.1} parent=35 // pred_check_branch
          %193 = sbr.rel (%p191) target = $region40
        $region39: #{tpu_custom_call.1} parent=35 // pred_region
          %194 = dma.done [#allocation4], 16
        $region40: #{tpu_custom_call.1} parent=35 // pred_fallthru
          _
        %195 = sfence
        %s196 = smul.u32 8, %s19
        %p197 = scmp.lt.s32.totalorder %s196, 15
        %s198 = scalar_select %p197, %s196, 15
        %s199 = scalar_lea.vmem %s0, %s198
        %p200 = pneg %p40
        %p201 = pneg %p37
        %s202 = smul.u32 128, %s19
        %p203 = scmp.lt.s32.totalorder %s202, 255
        %s204 = scalar_select %p203, %s202, 255
        %s205 = smul.addr %s204, 8
        %s206 = scalar_lea.vmem %s1, %s205
        %p207 = pneg %p66
        %p208 = pneg %p63
        %p209 = pneg %p87
        %p210 = pneg %p84
        %p211 = pneg %p108
        %p212 = pneg %p105
        %p213 = pneg %p134
        %p214 = pneg %p131
        %s215 = sand.u32 %s121, 1
        %s216 = scalar_lea.sflag [#allocation3], %s215
        %s217 = sand.u32 %s121, 1
        %s218 = smul.addr %s217, 8
        %s219 = scalar_lea.vmem [#allocation5], %s218
        %s220 = smul.u32 8, %s19
        %p221 = scmp.lt.s32.totalorder %s220, 15
        %s222 = scalar_select %p221, %s220, 15
        %s223 = scalar_lea.vmem %s0, %s222
        %s224 = smul.u32 8, %s19
        %s225 = smul.u32 128, %s19
        %p226 = scmp.lt.s32.totalorder %s225, 255
        %s227 = scalar_select %p226, %s225, 255
        %s228 = smul.addr %s227, 8
        %s229 = scalar_lea.vmem %s1, %s228
        %s230 = smul.u32 128, %s19
        %s231 = smul.u32 8, %s19
        %v232 = vld [vmem:[%s2] sm:$0x7]
        %v233 = vld [vmem:[%s229] sm:$0xff]
        %v234 = vld [vmem:[%s229 + $0x8] sm:$0xff]
        %v235 = vld [vmem:[%s229 + $0x10] sm:$0xff]
        %v236 = vld [vmem:[%s229 + $0x18] sm:$0xff]
        %v237 = vld [vmem:[%s229 + $0x20] sm:$0xff]
        %v238 = vld [vmem:[%s229 + $0x28] sm:$0xff]
        %v239 = vld [vmem:[%s229 + $0x30] sm:$0xff]
        %v240 = vld [vmem:[%s229 + $0x38] sm:$0xff]
        %v241 = vld [vmem:[%s229 + $0x40] sm:$0xff]
        %v242 = vld [vmem:[%s229 + $0x48] sm:$0xff]
        %v243 = vld [vmem:[%s229 + $0x50] sm:$0xff]
        %v244 = vld [vmem:[%s229 + $0x58] sm:$0xff]
        %v245 = vld [vmem:[%s229 + $0x60] sm:$0xff]
        %v246 = vld [vmem:[%s229 + $0x68] sm:$0xff]
        %v247 = vld [vmem:[%s229 + $0x70] sm:$0xff]
        %v248 = vld [vmem:[%s229 + $0x78] sm:$0xff]
        %v249 = vld [vmem:[%s229 + $0x80] sm:$0xff]
        %v250 = vld [vmem:[%s229 + $0x88] sm:$0xff]
        %v251 = vld [vmem:[%s229 + $0x90] sm:$0xff]
        %v252 = vld [vmem:[%s229 + $0x98] sm:$0xff]
        %v253 = vld [vmem:[%s229 + $0xa0] sm:$0xff]
        %v254 = vld [vmem:[%s229 + $0xa8] sm:$0xff]
        %v255 = vld [vmem:[%s229 + $0xb0] sm:$0xff]
        %v256 = vld [vmem:[%s229 + $0xb8] sm:$0xff]
        %v257 = vld [vmem:[%s229 + $0xc0] sm:$0xff]
        %v258 = vld [vmem:[%s229 + $0xc8] sm:$0xff]
        %v259 = vld [vmem:[%s229 + $0xd0] sm:$0xff]
        %v260 = vld [vmem:[%s229 + $0xd8] sm:$0xff]
        %v261 = vld [vmem:[%s229 + $0xe0] sm:$0xff]
        %v262 = vld [vmem:[%s229 + $0xe8] sm:$0xff]
        %v263 = vld [vmem:[%s229 + $0xf0] sm:$0xff]
        %v264 = vld [vmem:[%s229 + $0xf8] sm:$0xff]
        %v265 = vld [vmem:[%s229 + $0x100] sm:$0xff]
        %v266 = vld [vmem:[%s229 + $0x108] sm:$0xff]
        %v267 = vld [vmem:[%s229 + $0x110] sm:$0xff]
        %v268 = vld [vmem:[%s229 + $0x118] sm:$0xff]
        %v269 = vld [vmem:[%s229 + $0x120] sm:$0xff]
        %v270 = vld [vmem:[%s229 + $0x128] sm:$0xff]
        %v271 = vld [vmem:[%s229 + $0x130] sm:$0xff]
        %v272 = vld [vmem:[%s229 + $0x138] sm:$0xff]
        %v273 = vld [vmem:[%s229 + $0x140] sm:$0xff]
        %v274 = vld [vmem:[%s229 + $0x148] sm:$0xff]
        %v275 = vld [vmem:[%s229 + $0x150] sm:$0xff]
        %v276 = vld [vmem:[%s229 + $0x158] sm:$0xff]
        %v277 = vld [vmem:[%s229 + $0x160] sm:$0xff]
        %v278 = vld [vmem:[%s229 + $0x168] sm:$0xff]
        %v279 = vld [vmem:[%s229 + $0x170] sm:$0xff]
        %v280 = vld [vmem:[%s229 + $0x178] sm:$0xff]
        %v281 = vld [vmem:[%s229 + $0x180] sm:$0xff]
        %v282 = vld [vmem:[%s229 + $0x188] sm:$0xff]
        %v283 = vld [vmem:[%s229 + $0x190] sm:$0xff]
        %v284 = vld [vmem:[%s229 + $0x198] sm:$0xff]
        %v285 = vld [vmem:[%s229 + $0x1a0] sm:$0xff]
        %v286 = vld [vmem:[%s229 + $0x1a8] sm:$0xff]
        %v287 = vld [vmem:[%s229 + $0x1b0] sm:$0xff]
        %v288 = vld [vmem:[%s229 + $0x1b8] sm:$0xff]
        %v289 = vld [vmem:[%s229 + $0x1c0] sm:$0xff]
        %v290 = vld [vmem:[%s229 + $0x1c8] sm:$0xff]
        %v291 = vld [vmem:[%s229 + $0x1d0] sm:$0xff]
        %v292 = vld [vmem:[%s229 + $0x1d8] sm:$0xff]
        %v293 = vld [vmem:[%s229 + $0x1e0] sm:$0xff]
        %v294 = vld [vmem:[%s229 + $0x1e8] sm:$0xff]
        %v295 = vld [vmem:[%s229 + $0x1f0] sm:$0xff]
        %v296 = vld [vmem:[%s229 + $0x1f8] sm:$0xff]
        %v297 = vld [vmem:[%s229 + $0x200] sm:$0xff]
        %v298 = vld [vmem:[%s229 + $0x208] sm:$0xff]
        %v299 = vld [vmem:[%s229 + $0x210] sm:$0xff]
        %v300 = vld [vmem:[%s229 + $0x218] sm:$0xff]
        %v301 = vld [vmem:[%s229 + $0x220] sm:$0xff]
        %v302 = vld [vmem:[%s229 + $0x228] sm:$0xff]
        %v303 = vld [vmem:[%s229 + $0x230] sm:$0xff]
        %v304 = vld [vmem:[%s229 + $0x238] sm:$0xff]
        %v305 = vld [vmem:[%s229 + $0x240] sm:$0xff]
        %v306 = vld [vmem:[%s229 + $0x248] sm:$0xff]
        %v307 = vld [vmem:[%s229 + $0x250] sm:$0xff]
        %v308 = vld [vmem:[%s229 + $0x258] sm:$0xff]
        %v309 = vld [vmem:[%s229 + $0x260] sm:$0xff]
        %v310 = vld [vmem:[%s229 + $0x268] sm:$0xff]
        %v311 = vld [vmem:[%s229 + $0x270] sm:$0xff]
        %v312 = vld [vmem:[%s229 + $0x278] sm:$0xff]
        %v313 = vld [vmem:[%s229 + $0x280] sm:$0xff]
        %v314 = vld [vmem:[%s229 + $0x288] sm:$0xff]
        %v315 = vld [vmem:[%s229 + $0x290] sm:$0xff]
        %v316 = vld [vmem:[%s229 + $0x298] sm:$0xff]
        %v317 = vld [vmem:[%s229 + $0x2a0] sm:$0xff]
        %v318 = vld [vmem:[%s229 + $0x2a8] sm:$0xff]
        %v319 = vld [vmem:[%s229 + $0x2b0] sm:$0xff]
        %v320 = vld [vmem:[%s229 + $0x2b8] sm:$0xff]
        %v321 = vld [vmem:[%s229 + $0x2c0] sm:$0xff]
        %v322 = vld [vmem:[%s229 + $0x2c8] sm:$0xff]
        %v323 = vld [vmem:[%s229 + $0x2d0] sm:$0xff]
        %v324 = vld [vmem:[%s229 + $0x2d8] sm:$0xff]
        %v325 = vld [vmem:[%s229 + $0x2e0] sm:$0xff]
        %v326 = vld [vmem:[%s229 + $0x2e8] sm:$0xff]
        %v327 = vld [vmem:[%s229 + $0x2f0] sm:$0xff]
        %v328 = vld [vmem:[%s229 + $0x2f8] sm:$0xff]
        %v329 = vld [vmem:[%s229 + $0x300] sm:$0xff]
        %v330 = vld [vmem:[%s229 + $0x308] sm:$0xff]
        %v331 = vld [vmem:[%s229 + $0x310] sm:$0xff]
        %v332 = vld [vmem:[%s229 + $0x318] sm:$0xff]
        %v333 = vld [vmem:[%s229 + $0x320] sm:$0xff]
        %v334 = vld [vmem:[%s229 + $0x328] sm:$0xff]
        %v335 = vld [vmem:[%s229 + $0x330] sm:$0xff]
        %v336 = vld [vmem:[%s229 + $0x338] sm:$0xff]
        %v337 = vld [vmem:[%s229 + $0x340] sm:$0xff]
        %v338 = vld [vmem:[%s229 + $0x348] sm:$0xff]
        %v339 = vld [vmem:[%s229 + $0x350] sm:$0xff]
        %v340 = vld [vmem:[%s229 + $0x358] sm:$0xff]
        %v341 = vld [vmem:[%s229 + $0x360] sm:$0xff]
        %v342 = vld [vmem:[%s229 + $0x368] sm:$0xff]
        %v343 = vld [vmem:[%s229 + $0x370] sm:$0xff]
        %v344 = vld [vmem:[%s229 + $0x378] sm:$0xff]
        %v345 = vld [vmem:[%s229 + $0x380] sm:$0xff]
        %v346 = vld [vmem:[%s229 + $0x388] sm:$0xff]
        %v347 = vld [vmem:[%s229 + $0x390] sm:$0xff]
        %v348 = vld [vmem:[%s229 + $0x398] sm:$0xff]
        %v349 = vld [vmem:[%s229 + $0x3a0] sm:$0xff]
        %v350 = vld [vmem:[%s229 + $0x3a8] sm:$0xff]
        %v351 = vld [vmem:[%s229 + $0x3b0] sm:$0xff]
        %v352 = vld [vmem:[%s229 + $0x3b8] sm:$0xff]
        %v353 = vld [vmem:[%s229 + $0x3c0] sm:$0xff]
        %v354 = vld [vmem:[%s229 + $0x3c8] sm:$0xff]
        %v355 = vld [vmem:[%s229 + $0x3d0] sm:$0xff]
        %v356 = vld [vmem:[%s229 + $0x3d8] sm:$0xff]
        %v357 = vld [vmem:[%s229 + $0x3e0] sm:$0xff]
        %v358 = vld [vmem:[%s229 + $0x3e8] sm:$0xff]
        %v359 = vld [vmem:[%s229 + $0x3f0] sm:$0xff]
        %v360 = vld [vmem:[%s229 + $0x3f8] sm:$0xff]
        %vm361 = vcmask 261120
        %v363 = vsel %vm361, %v232, 0
        %v366 = vsel %vm361, %v233, 0
        %v369 = vsel %vm361, %v234, 0
        %v372 = vsel %vm361, %v235, 0
        %v375 = vsel %vm361, %v236, 0
        %v378 = vsel %vm361, %v237, 0
        %v381 = vsel %vm361, %v238, 0
        %v384 = vsel %vm361, %v239, 0
        %v387 = vsel %vm361, %v240, 0
        %v390 = vsel %vm361, %v241, 0
        %v393 = vsel %vm361, %v242, 0
        %v396 = vsel %vm361, %v243, 0
        %v399 = vsel %vm361, %v244, 0
        %v402 = vsel %vm361, %v245, 0
        %v405 = vsel %vm361, %v246, 0
        %v408 = vsel %vm361, %v247, 0
        %v411 = vsel %vm361, %v248, 0
        %v414 = vsel %vm361, %v249, 0
        %v417 = vsel %vm361, %v250, 0
        %v420 = vsel %vm361, %v251, 0
        %v423 = vsel %vm361, %v252, 0
        %v426 = vsel %vm361, %v253, 0
        %v429 = vsel %vm361, %v254, 0
        %v432 = vsel %vm361, %v255, 0
        %v435 = vsel %vm361, %v256, 0
        %v438 = vsel %vm361, %v257, 0
        %v441 = vsel %vm361, %v258, 0
        %v444 = vsel %vm361, %v259, 0
        %v447 = vsel %vm361, %v260, 0
        %v450 = vsel %vm361, %v261, 0
        %v453 = vsel %vm361, %v262, 0
        %v456 = vsel %vm361, %v263, 0
        %v459 = vsel %vm361, %v264, 0
        %v462 = vsel %vm361, %v265, 0
        %v465 = vsel %vm361, %v266, 0
        %v468 = vsel %vm361, %v267, 0
        %v471 = vsel %vm361, %v268, 0
        %v474 = vsel %vm361, %v269, 0
        %v477 = vsel %vm361, %v270, 0
        %v480 = vsel %vm361, %v271, 0
        %v483 = vsel %vm361, %v272, 0
        %v486 = vsel %vm361, %v273, 0
        %v489 = vsel %vm361, %v274, 0
        %v492 = vsel %vm361, %v275, 0
        %v495 = vsel %vm361, %v276, 0
        %v498 = vsel %vm361, %v277, 0
        %v501 = vsel %vm361, %v278, 0
        %v504 = vsel %vm361, %v279, 0
        %v507 = vsel %vm361, %v280, 0
        %v510 = vsel %vm361, %v281, 0
        %v513 = vsel %vm361, %v282, 0
        %v516 = vsel %vm361, %v283, 0
        %v519 = vsel %vm361, %v284, 0
        %v522 = vsel %vm361, %v285, 0
        %v525 = vsel %vm361, %v286, 0
        %v528 = vsel %vm361, %v287, 0
        %v531 = vsel %vm361, %v288, 0
        %v534 = vsel %vm361, %v289, 0
        %v537 = vsel %vm361, %v290, 0
        %v540 = vsel %vm361, %v291, 0
        %v543 = vsel %vm361, %v292, 0
        %v546 = vsel %vm361, %v293, 0
        %v549 = vsel %vm361, %v294, 0
        %v552 = vsel %vm361, %v295, 0
        %v555 = vsel %vm361, %v296, 0
        %v558 = vsel %vm361, %v297, 0
        %v561 = vsel %vm361, %v298, 0
        %v564 = vsel %vm361, %v299, 0
        %v567 = vsel %vm361, %v300, 0
        %v570 = vsel %vm361, %v301, 0
        %v573 = vsel %vm361, %v302, 0
        %v576 = vsel %vm361, %v303, 0
        %v579 = vsel %vm361, %v304, 0
        %v582 = vsel %vm361, %v305, 0
        %v585 = vsel %vm361, %v306, 0
        %v588 = vsel %vm361, %v307, 0
        %v591 = vsel %vm361, %v308, 0
        %v594 = vsel %vm361, %v309, 0
        %v597 = vsel %vm361, %v310, 0
        %v600 = vsel %vm361, %v311, 0
        %v603 = vsel %vm361, %v312, 0
        %v606 = vsel %vm361, %v313, 0
        %v609 = vsel %vm361, %v314, 0
        %v612 = vsel %vm361, %v315, 0
        %v615 = vsel %vm361, %v316, 0
        %v618 = vsel %vm361, %v317, 0
        %v621 = vsel %vm361, %v318, 0
        %v624 = vsel %vm361, %v319, 0
        %v627 = vsel %vm361, %v320, 0
        %v630 = vsel %vm361, %v321, 0
        %v633 = vsel %vm361, %v322, 0
        %v636 = vsel %vm361, %v323, 0
        %v639 = vsel %vm361, %v324, 0
        %v642 = vsel %vm361, %v325, 0
        %v645 = vsel %vm361, %v326, 0
        %v648 = vsel %vm361, %v327, 0
        %v651 = vsel %vm361, %v328, 0
        %v654 = vsel %vm361, %v329, 0
        %v657 = vsel %vm361, %v330, 0
        %v660 = vsel %vm361, %v331, 0
        %v663 = vsel %vm361, %v332, 0
        %v666 = vsel %vm361, %v333, 0
        %v669 = vsel %vm361, %v334, 0
        %v672 = vsel %vm361, %v335, 0
        %v675 = vsel %vm361, %v336, 0
        %v678 = vsel %vm361, %v337, 0
        %v681 = vsel %vm361, %v338, 0
        %v684 = vsel %vm361, %v339, 0
        %v687 = vsel %vm361, %v340, 0
        %v690 = vsel %vm361, %v341, 0
        %v693 = vsel %vm361, %v342, 0
        %v696 = vsel %vm361, %v343, 0
        %v699 = vsel %vm361, %v344, 0
        %v702 = vsel %vm361, %v345, 0
        %v705 = vsel %vm361, %v346, 0
        %v708 = vsel %vm361, %v347, 0
        %v711 = vsel %vm361, %v348, 0
        %v714 = vsel %vm361, %v349, 0
        %v717 = vsel %vm361, %v350, 0
        %v720 = vsel %vm361, %v351, 0
        %v723 = vsel %vm361, %v352, 0
        %v726 = vsel %vm361, %v353, 0
        %v729 = vsel %vm361, %v354, 0
        %v732 = vsel %vm361, %v355, 0
        %v735 = vsel %vm361, %v356, 0
        %v738 = vsel %vm361, %v357, 0
        %v741 = vsel %vm361, %v358, 0
        %v744 = vsel %vm361, %v359, 0
        %v747 = vsel %vm361, %v360, 0
        %749 = vmatprep.subr.mxu0 0.0
        %750 = vmatpush1.xpose.msra.mxu0 %v366
        %751 = vmatprep.subr.mxu0 0.0
        %752 = vmatpush1.xpose.msra.mxu0 %v369
        %753 = vmatprep.subr.mxu0 0.0
        %754 = vmatpush1.xpose.msra.mxu0 %v372
        %755 = vmatprep.subr.mxu0 0.0
        %756 = vmatpush1.xpose.msra.mxu0 %v375
        %757 = vmatprep.subr.mxu0 0.0
        %758 = vmatpush1.xpose.msra.mxu0 %v378
        %759 = vmatprep.subr.mxu0 0.0
        %760 = vmatpush1.xpose.msra.mxu0 %v381
        %761 = vmatprep.subr.mxu0 0.0
        %762 = vmatpush1.xpose.msra.mxu0 %v384
        %763 = vmatprep.subr.mxu0 0.0
        %764 = vmatpush1.xpose.msra.mxu0 %v387
        %765 = vmatprep.subr.mxu0 0.0
        %766 = vmatpush1.xpose.msra.mxu0 %v390
        %767 = vmatprep.subr.mxu0 0.0
        %768 = vmatpush1.xpose.msra.mxu0 %v393
        %769 = vmatprep.subr.mxu0 0.0
        %770 = vmatpush1.xpose.msra.mxu0 %v396
        %771 = vmatprep.subr.mxu0 0.0
        %772 = vmatpush1.xpose.msra.mxu0 %v399
        %773 = vmatprep.subr.mxu0 0.0
        %774 = vmatpush1.xpose.msra.mxu0 %v402
        %775 = vmatprep.subr.mxu0 0.0
        %776 = vmatpush1.xpose.msra.mxu0 %v405
        %777 = vmatprep.subr.mxu0 0.0
        %778 = vmatpush1.xpose.msra.mxu0 %v408
        %779 = vmatprep.subr.mxu0 0.0
        %780 = vmatpush1.xpose.msra.mxu0 %v411
        %781 = vmatprep.subr.mxu0 0.0
        %782 = vmatpush1.xpose.msra.mxu0 %v414
        %783 = vmatprep.subr.mxu0 0.0
        %784 = vmatpush1.xpose.msra.mxu0 %v417
        %785 = vmatprep.subr.mxu0 0.0
        %786 = vmatpush1.xpose.msra.mxu0 %v420
        %787 = vmatprep.subr.mxu0 0.0
        %788 = vmatpush1.xpose.msra.mxu0 %v423
        %789 = vmatprep.subr.mxu0 0.0
        %790 = vmatpush1.xpose.msra.mxu0 %v426
        %791 = vmatprep.subr.mxu0 0.0
        %792 = vmatpush1.xpose.msra.mxu0 %v429
        %793 = vmatprep.subr.mxu0 0.0
        %794 = vmatpush1.xpose.msra.mxu0 %v432
        %795 = vmatprep.subr.mxu0 0.0
        %796 = vmatpush1.xpose.msra.mxu0 %v435
        %797 = vmatprep.subr.mxu0 0.0
        %798 = vmatpush1.xpose.msra.mxu0 %v438
        %799 = vmatprep.subr.mxu0 0.0
        %800 = vmatpush1.xpose.msra.mxu0 %v441
        %801 = vmatprep.subr.mxu0 0.0
        %802 = vmatpush1.xpose.msra.mxu0 %v444
        %803 = vmatprep.subr.mxu0 0.0
        %804 = vmatpush1.xpose.msra.mxu0 %v447
        %805 = vmatprep.subr.mxu0 0.0
        %806 = vmatpush1.xpose.msra.mxu0 %v450
        %807 = vmatprep.subr.mxu0 0.0
        %808 = vmatpush1.xpose.msra.mxu0 %v453
        %809 = vmatprep.subr.mxu0 0.0
        %810 = vmatpush1.xpose.msra.mxu0 %v456
        %811 = vmatprep.subr.mxu0 0.0
        %812 = vmatpush1.xpose.msra.mxu0 %v459
        %813 = vmatprep.mubr.f32.mxu0 0.0
        %814 = vmatmul.mubr.f32.gmra.mrb[0].mxu0 %v363
        %v815 = vpop.f32.mrb[0].mxu0
        %v816 = vadd.f32 0.0, %v815
        %v817 = vpop.f32.mrb[0].mxu0
        %v818 = vadd.f32 0.0, %v817
        %819 = vdwg.mxu0
        %820 = vmatprep.subr.mxu0 0.0
        %821 = vmatpush1.xpose.msra.mxu0 %v462
        %822 = vmatprep.subr.mxu0 0.0
        %823 = vmatpush1.xpose.msra.mxu0 %v465
        %824 = vmatprep.subr.mxu0 0.0
        %825 = vmatpush1.xpose.msra.mxu0 %v468
        %826 = vmatprep.subr.mxu0 0.0
        %827 = vmatpush1.xpose.msra.mxu0 %v471
        %828 = vmatprep.subr.mxu0 0.0
        %829 = vmatpush1.xpose.msra.mxu0 %v474
        %830 = vmatprep.subr.mxu0 0.0
        %831 = vmatpush1.xpose.msra.mxu0 %v477
        %832 = vmatprep.subr.mxu0 0.0
        %833 = vmatpush1.xpose.msra.mxu0 %v480
        %834 = vmatprep.subr.mxu0 0.0
        %835 = vmatpush1.xpose.msra.mxu0 %v483
        %836 = vmatprep.subr.mxu0 0.0
        %837 = vmatpush1.xpose.msra.mxu0 %v486
        %838 = vmatprep.subr.mxu0 0.0
        %839 = vmatpush1.xpose.msra.mxu0 %v489
        %840 = vmatprep.subr.mxu0 0.0
        %841 = vmatpush1.xpose.msra.mxu0 %v492
        %842 = vmatprep.subr.mxu0 0.0
        %843 = vmatpush1.xpose.msra.mxu0 %v495
        %844 = vmatprep.subr.mxu0 0.0
        %845 = vmatpush1.xpose.msra.mxu0 %v498
        %846 = vmatprep.subr.mxu0 0.0
        %847 = vmatpush1.xpose.msra.mxu0 %v501
        %848 = vmatprep.subr.mxu0 0.0
        %849 = vmatpush1.xpose.msra.mxu0 %v504
        %850 = vmatprep.subr.mxu0 0.0
        %851 = vmatpush1.xpose.msra.mxu0 %v507
        %852 = vmatprep.subr.mxu0 0.0
        %853 = vmatpush1.xpose.msra.mxu0 %v510
        %854 = vmatprep.subr.mxu0 0.0
        %855 = vmatpush1.xpose.msra.mxu0 %v513
        %856 = vmatprep.subr.mxu0 0.0
        %857 = vmatpush1.xpose.msra.mxu0 %v516
        %858 = vmatprep.subr.mxu0 0.0
        %859 = vmatpush1.xpose.msra.mxu0 %v519
        %860 = vmatprep.subr.mxu0 0.0
        %861 = vmatpush1.xpose.msra.mxu0 %v522
        %862 = vmatprep.subr.mxu0 0.0
        %863 = vmatpush1.xpose.msra.mxu0 %v525
        %864 = vmatprep.subr.mxu0 0.0
        %865 = vmatpush1.xpose.msra.mxu0 %v528
        %866 = vmatprep.subr.mxu0 0.0
        %867 = vmatpush1.xpose.msra.mxu0 %v531
        %868 = vmatprep.subr.mxu0 0.0
        %869 = vmatpush1.xpose.msra.mxu0 %v534
        %870 = vmatprep.subr.mxu0 0.0
        %871 = vmatpush1.xpose.msra.mxu0 %v537
        %872 = vmatprep.subr.mxu0 0.0
        %873 = vmatpush1.xpose.msra.mxu0 %v540
        %874 = vmatprep.subr.mxu0 0.0
        %875 = vmatpush1.xpose.msra.mxu0 %v543
        %876 = vmatprep.subr.mxu0 0.0
        %877 = vmatpush1.xpose.msra.mxu0 %v546
        %878 = vmatprep.subr.mxu0 0.0
        %879 = vmatpush1.xpose.msra.mxu0 %v549
        %880 = vmatprep.subr.mxu0 0.0
        %881 = vmatpush1.xpose.msra.mxu0 %v552
        %882 = vmatprep.subr.mxu0 0.0
        %883 = vmatpush1.xpose.msra.mxu0 %v555
        %884 = vmatprep.mubr.f32.mxu0 0.0
        %885 = vmatmul.mubr.f32.gmra.mrb[0].mxu0 %v363
        %v886 = vpop.f32.mrb[0].mxu0
        %v887 = vadd.f32 0.0, %v886
        %v888 = vpop.f32.mrb[0].mxu0
        %v889 = vadd.f32 0.0, %v888
        %890 = vdwg.mxu0
        %891 = vmatprep.subr.mxu0 0.0
        %892 = vmatpush1.xpose.msra.mxu0 %v558
        %893 = vmatprep.subr.mxu0 0.0
        %894 = vmatpush1.xpose.msra.mxu0 %v561
        %895 = vmatprep.subr.mxu0 0.0
        %896 = vmatpush1.xpose.msra.mxu0 %v564
        %897 = vmatprep.subr.mxu0 0.0
        %898 = vmatpush1.xpose.msra.mxu0 %v567
        %899 = vmatprep.subr.mxu0 0.0
        %900 = vmatpush1.xpose.msra.mxu0 %v570
        %901 = vmatprep.subr.mxu0 0.0
        %902 = vmatpush1.xpose.msra.mxu0 %v573
        %903 = vmatprep.subr.mxu0 0.0
        %904 = vmatpush1.xpose.msra.mxu0 %v576
        %905 = vmatprep.subr.mxu0 0.0
        %906 = vmatpush1.xpose.msra.mxu0 %v579
        %907 = vmatprep.subr.mxu0 0.0
        %908 = vmatpush1.xpose.msra.mxu0 %v582
        %909 = vmatprep.subr.mxu0 0.0
        %910 = vmatpush1.xpose.msra.mxu0 %v585
        %911 = vmatprep.subr.mxu0 0.0
        %912 = vmatpush1.xpose.msra.mxu0 %v588
        %913 = vmatprep.subr.mxu0 0.0
        %914 = vmatpush1.xpose.msra.mxu0 %v591
        %915 = vmatprep.subr.mxu0 0.0
        %916 = vmatpush1.xpose.msra.mxu0 %v594
        %917 = vmatprep.subr.mxu0 0.0
        %918 = vmatpush1.xpose.msra.mxu0 %v597
        %919 = vmatprep.subr.mxu0 0.0
        %920 = vmatpush1.xpose.msra.mxu0 %v600
        %921 = vmatprep.subr.mxu0 0.0
        %922 = vmatpush1.xpose.msra.mxu0 %v603
        %923 = vmatprep.subr.mxu0 0.0
        %924 = vmatpush1.xpose.msra.mxu0 %v606
        %925 = vmatprep.subr.mxu0 0.0
        %926 = vmatpush1.xpose.msra.mxu0 %v609
        %927 = vmatprep.subr.mxu0 0.0
        %928 = vmatpush1.xpose.msra.mxu0 %v612
        %929 = vmatprep.subr.mxu0 0.0
        %930 = vmatpush1.xpose.msra.mxu0 %v615
        %931 = vmatprep.subr.mxu0 0.0
        %932 = vmatpush1.xpose.msra.mxu0 %v618
        %933 = vmatprep.subr.mxu0 0.0
        %934 = vmatpush1.xpose.msra.mxu0 %v621
        %935 = vmatprep.subr.mxu0 0.0
        %936 = vmatpush1.xpose.msra.mxu0 %v624
        %937 = vmatprep.subr.mxu0 0.0
        %938 = vmatpush1.xpose.msra.mxu0 %v627
        %939 = vmatprep.subr.mxu0 0.0
        %940 = vmatpush1.xpose.msra.mxu0 %v630
        %941 = vmatprep.subr.mxu0 0.0
        %942 = vmatpush1.xpose.msra.mxu0 %v633
        %943 = vmatprep.subr.mxu0 0.0
        %944 = vmatpush1.xpose.msra.mxu0 %v636
        %945 = vmatprep.subr.mxu0 0.0
        %946 = vmatpush1.xpose.msra.mxu0 %v639
        %947 = vmatprep.subr.mxu0 0.0
        %948 = vmatpush1.xpose.msra.mxu0 %v642
        %949 = vmatprep.subr.mxu0 0.0
        %950 = vmatpush1.xpose.msra.mxu0 %v645
        %951 = vmatprep.subr.mxu0 0.0
        %952 = vmatpush1.xpose.msra.mxu0 %v648
        %953 = vmatprep.subr.mxu0 0.0
        %954 = vmatpush1.xpose.msra.mxu0 %v651
        %955 = vmatprep.mubr.f32.mxu0 0.0
        %956 = vmatmul.mubr.f32.gmra.mrb[0].mxu0 %v363
        %v957 = vpop.f32.mrb[0].mxu0
        %v958 = vadd.f32 0.0, %v957
        %v959 = vpop.f32.mrb[0].mxu0
        %v960 = vadd.f32 0.0, %v959
        %961 = vdwg.mxu0
        %962 = vmatprep.subr.mxu0 0.0
        %963 = vmatpush1.xpose.msra.mxu0 %v654
        %964 = vmatprep.subr.mxu0 0.0
        %965 = vmatpush1.xpose.msra.mxu0 %v657
        %966 = vmatprep.subr.mxu0 0.0
        %967 = vmatpush1.xpose.msra.mxu0 %v660
        %968 = vmatprep.subr.mxu0 0.0
        %969 = vmatpush1.xpose.msra.mxu0 %v663
        %970 = vmatprep.subr.mxu0 0.0
        %971 = vmatpush1.xpose.msra.mxu0 %v666
        %972 = vmatprep.subr.mxu0 0.0
        %973 = vmatpush1.xpose.msra.mxu0 %v669
        %974 = vmatprep.subr.mxu0 0.0
        %975 = vmatpush1.xpose.msra.mxu0 %v672
        %976 = vmatprep.subr.mxu0 0.0
        %977 = vmatpush1.xpose.msra.mxu0 %v675
        %978 = vmatprep.subr.mxu0 0.0
        %979 = vmatpush1.xpose.msra.mxu0 %v678
        %980 = vmatprep.subr.mxu0 0.0
        %981 = vmatpush1.xpose.msra.mxu0 %v681
        %982 = vmatprep.subr.mxu0 0.0
        %983 = vmatpush1.xpose.msra.mxu0 %v684
        %984 = vmatprep.subr.mxu0 0.0
        %985 = vmatpush1.xpose.msra.mxu0 %v687
        %986 = vmatprep.subr.mxu0 0.0
        %987 = vmatpush1.xpose.msra.mxu0 %v690
        %988 = vmatprep.subr.mxu0 0.0
        %989 = vmatpush1.xpose.msra.mxu0 %v693
        %990 = vmatprep.subr.mxu0 0.0
        %991 = vmatpush1.xpose.msra.mxu0 %v696
        %992 = vmatprep.subr.mxu0 0.0
        %993 = vmatpush1.xpose.msra.mxu0 %v699
        %994 = vmatprep.subr.mxu0 0.0
        %995 = vmatpush1.xpose.msra.mxu0 %v702
        %996 = vmatprep.subr.mxu0 0.0
        %997 = vmatpush1.xpose.msra.mxu0 %v705
        %998 = vmatprep.subr.mxu0 0.0
        %999 = vmatpush1.xpose.msra.mxu0 %v708
        %1000 = vmatprep.subr.mxu0 0.0
        %1001 = vmatpush1.xpose.msra.mxu0 %v711
        %1002 = vmatprep.subr.mxu0 0.0
        %1003 = vmatpush1.xpose.msra.mxu0 %v714
        %1004 = vmatprep.subr.mxu0 0.0
        %1005 = vmatpush1.xpose.msra.mxu0 %v717
        %1006 = vmatprep.subr.mxu0 0.0
        %1007 = vmatpush1.xpose.msra.mxu0 %v720
        %1008 = vmatprep.subr.mxu0 0.0
        %1009 = vmatpush1.xpose.msra.mxu0 %v723
        %1010 = vmatprep.subr.mxu0 0.0
        %1011 = vmatpush1.xpose.msra.mxu0 %v726
        %1012 = vmatprep.subr.mxu0 0.0
        %1013 = vmatpush1.xpose.msra.mxu0 %v729
        %1014 = vmatprep.subr.mxu0 0.0
        %1015 = vmatpush1.xpose.msra.mxu0 %v732
        %1016 = vmatprep.subr.mxu0 0.0
        %1017 = vmatpush1.xpose.msra.mxu0 %v735
        %1018 = vmatprep.subr.mxu0 0.0
        %1019 = vmatpush1.xpose.msra.mxu0 %v738
        %1020 = vmatprep.subr.mxu0 0.0
        %1021 = vmatpush1.xpose.msra.mxu0 %v741
        %1022 = vmatprep.subr.mxu0 0.0
        %1023 = vmatpush1.xpose.msra.mxu0 %v744
        %1024 = vmatprep.subr.mxu0 0.0
        %1025 = vmatpush1.xpose.msra.mxu0 %v747
        %1026 = vmatprep.mubr.f32.mxu0 0.0
        %1027 = vmatmul.mubr.f32.gmra.mrb[0].mxu0 %v363
        %v1028 = vpop.f32.mrb[0].mxu0
        %v1029 = vadd.f32 0.0, %v1028
        %v1030 = vpop.f32.mrb[0].mxu0
        %v1031 = vadd.f32 0.0, %v1030
        %1032 = vdwg.mxu0
        %s1033 = sld [smem:[#allocation2]]
        %v1034 = vstv %s1033
        %v1035 = vadd.f32 %v816, %v1034
        %v1036 = vadd.f32 %v818, %v1034
        %v1037 = vadd.f32 %v887, %v1034
        %v1038 = vadd.f32 %v889, %v1034
        %v1039 = vadd.f32 %v958, %v1034
        %v1040 = vadd.f32 %v960, %v1034
        %v1041 = vadd.f32 %v1029, %v1034
        %v1042 = vadd.f32 %v1031, %v1034
        %s1043 = sld [smem:[#allocation2 + $0x1]]
        %v1044 = vstv %s1043
        %v1045 = vadd.f32 %v816, %v1044
        %v1046 = vadd.f32 %v818, %v1044
        %v1047 = vadd.f32 %v887, %v1044
        %v1048 = vadd.f32 %v889, %v1044
        %v1049 = vadd.f32 %v958, %v1044
        %v1050 = vadd.f32 %v960, %v1044
        %v1051 = vadd.f32 %v1029, %v1044
        %v1052 = vadd.f32 %v1031, %v1044
        %s1053 = sld [smem:[#allocation2 + $0x2]]
        %v1054 = vstv %s1053
        %v1055 = vadd.f32 %v816, %v1054
        %v1056 = vadd.f32 %v818, %v1054
        %v1057 = vadd.f32 %v887, %v1054
        %v1058 = vadd.f32 %v889, %v1054
        %v1059 = vadd.f32 %v958, %v1054
        %v1060 = vadd.f32 %v960, %v1054
        %v1061 = vadd.f32 %v1029, %v1054
        %v1062 = vadd.f32 %v1031, %v1054
        %v1063 = vld [vmem:[%s223] sm:$0xff]
        %v1065 = vlaneseq
        %v1066 = vshrl.u32 %v1065, 7
        %v1067 = vsub.s32 0, %v1066
        %v1068 = vrot.slane %v1063, %v1067
        %v1069 = vlaneseq
        %v1070 = vshrl.u32 %v1069, 7
        %v1071 = vsub.s32 1, %v1070
        %v1072 = vrot.slane %v1063, %v1071
        %v1073 = vlaneseq
        %v1074 = vshrl.u32 %v1073, 7
        %v1075 = vsub.s32 2, %v1074
        %v1076 = vrot.slane %v1063, %v1075
        %v1077 = vlaneseq
        %v1078 = vshrl.u32 %v1077, 7
        %v1079 = vsub.s32 3, %v1078
        %v1080 = vrot.slane %v1063, %v1079
        %v1081 = vlaneseq
        %v1082 = vshrl.u32 %v1081, 7
        %v1083 = vsub.s32 4, %v1082
        %v1084 = vrot.slane %v1063, %v1083
        %v1085 = vlaneseq
        %v1086 = vshrl.u32 %v1085, 7
        %v1087 = vsub.s32 5, %v1086
        %v1088 = vrot.slane %v1063, %v1087
        %v1089 = vlaneseq
        %v1090 = vshrl.u32 %v1089, 7
        %v1091 = vsub.s32 6, %v1090
        %v1092 = vrot.slane %v1063, %v1091
        %v1093 = vlaneseq
        %v1094 = vshrl.u32 %v1093, 7
        %v1095 = vsub.s32 7, %v1094
        %v1096 = vrot.slane %v1063, %v1095
        %v1105 = vmul.f32 %v1035, %v1068
        %v1106 = vmul.f32 %v1036, %v1072
        %v1107 = vmul.f32 %v1037, %v1076
        %v1108 = vmul.f32 %v1038, %v1080
        %v1109 = vmul.f32 %v1039, %v1084
        %v1110 = vmul.f32 %v1040, %v1088
        %v1111 = vmul.f32 %v1041, %v1092
        %v1112 = vmul.f32 %v1042, %v1096
        %v1121 = vrot.slane %v1045, 1
        %v1122 = vrot.slane %v1046, 1
        %v1123 = vrot.slane %v1047, 1
        %v1124 = vrot.slane %v1048, 1
        %v1125 = vrot.slane %v1049, 1
        %v1126 = vrot.slane %v1050, 1
        %v1127 = vrot.slane %v1051, 1
        %v1128 = vrot.slane %v1052, 1
        %v1137 = vadd.f32 %v1105, %v1121
        %v1138 = vadd.f32 %v1106, %v1122
        %v1139 = vadd.f32 %v1107, %v1123
        %v1140 = vadd.f32 %v1108, %v1124
        %v1141 = vadd.f32 %v1109, %v1125
        %v1142 = vadd.f32 %v1110, %v1126
        %v1143 = vadd.f32 %v1111, %v1127
        %v1144 = vadd.f32 %v1112, %v1128
        %v1145 = vmul.f32 %v1137, %v1068
        %v1146 = vmul.f32 %v1138, %v1072
        %v1147 = vmul.f32 %v1139, %v1076
        %v1148 = vmul.f32 %v1140, %v1080
        %v1149 = vmul.f32 %v1141, %v1084
        %v1150 = vmul.f32 %v1142, %v1088
        %v1151 = vmul.f32 %v1143, %v1092
        %v1152 = vmul.f32 %v1144, %v1096
        %v1161 = vrot.slane %v1055, 2
        %v1162 = vrot.slane %v1056, 2
        %v1163 = vrot.slane %v1057, 2
        %v1164 = vrot.slane %v1058, 2
        %v1165 = vrot.slane %v1059, 2
        %v1166 = vrot.slane %v1060, 2
        %v1167 = vrot.slane %v1061, 2
        %v1168 = vrot.slane %v1062, 2
        %v1177 = vadd.f32 %v1145, %v1161
        %v1178 = vadd.f32 %v1146, %v1162
        %v1179 = vadd.f32 %v1147, %v1163
        %v1180 = vadd.f32 %v1148, %v1164
        %v1181 = vadd.f32 %v1149, %v1165
        %v1182 = vadd.f32 %v1150, %v1166
        %v1183 = vadd.f32 %v1151, %v1167
        %v1184 = vadd.f32 %v1152, %v1168
        %v1193 = vcombine.low %v1177, %v1178
        %v1194 = vcombine.low %v1179, %v1180
        %v1195 = vcombine.low %v1181, %v1182
        %v1196 = vcombine.low %v1183, %v1184
        %v1198 = vunpack.c.l.s4 1966171168
        %v1199 = vunpack.c.0.s8 %v1198
        %v1200 = vlaneseq
        %v1201 = vshrl.u32 %v1200, 7
        %v1202 = vsub.s32 %v1199, %v1201
        %v1203 = vrot.slane %v1193, %v1202
        %v1205 = vunpack.c.l.s4 1966171168
        %v1206 = vunpack.c.0.s8 %v1205
        %v1207 = vlaneseq
        %v1208 = vshrl.u32 %v1207, 7
        %v1209 = vsub.s32 %v1206, %v1208
        %v1210 = vrot.slane %v1194, %v1209
        %v1212 = vunpack.c.l.s4 1966171168
        %v1213 = vunpack.c.0.s8 %v1212
        %v1214 = vlaneseq
        %v1215 = vshrl.u32 %v1214, 7
        %v1216 = vsub.s32 %v1213, %v1215
        %v1217 = vrot.slane %v1195, %v1216
        %v1219 = vunpack.c.l.s4 1966171168
        %v1220 = vunpack.c.0.s8 %v1219
        %v1221 = vlaneseq
        %v1222 = vshrl.u32 %v1221, 7
        %v1223 = vsub.s32 %v1220, %v1222
        %v1224 = vrot.slane %v1196, %v1223
        %v1225 = vcombine.low %v1203, %v1210
        %v1226 = vcombine.low %v1217, %v1224
        %v1228 = vunpack.c.l.s4 1966171168
        %v1229 = vunpack.c.0.s8 %v1228
        %v1230 = vlaneseq
        %v1231 = vshrl.u32 %v1230, 7
        %v1232 = vsub.s32 %v1229, %v1231
        %v1233 = vrot.slane %v1225, %v1232
        %v1235 = vunpack.c.l.s4 1966171168
        %v1236 = vunpack.c.0.s8 %v1235
        %v1237 = vlaneseq
        %v1238 = vshrl.u32 %v1237, 7
        %v1239 = vsub.s32 %v1236, %v1238
        %v1240 = vrot.slane %v1226, %v1239
        %v1241 = vcombine.low %v1233, %v1240
        %1243 = vst [vmem:[%s219] sm:$0xff] %v1241
        %s1244 = sand.u32 %s121, 1
        %s1245 = scalar_lea.sflag [#allocation3], %s1244
        %s1246 = sand.u32 %s121, 1
        %s1247 = smul.addr %s1246, 8
        %s1248 = scalar_lea.vmem [#allocation5], %s1247
        // Predicated region
        $region41: #{tpu_custom_call.1} parent=35 // pred_check
          %p1249 = pneg %p131
        $region42: #{tpu_custom_call.1} parent=35 // pred_check_branch
          %1251 = sbr.rel (%p1249) target = $region44
        $region43: #{tpu_custom_call.1} parent=35 // pred_region
          %s1252 = smul.u32 8, %s19
          %s1254 = ssub.s32 128, 128
          %1255 = vsyncadd %s1245, %s1254
          %s1256 = smul.addr %s1252, 16
          %s1257 = scalar_lea.hbm %s4, %s1256
          %s1259 = sshll.u32 %s1248, 4
          %s1260 = int_to_ptr.vmem [resolvable:$true] %s1259
          %1262 = dma.vmem_to_hbm [thread:$0]  %s1260, 128, %s1257, %s1245
        $region44: #{tpu_custom_call.1} parent=35 // pred_fallthru
          _
      $region36: #{tpu_custom_call.1} parent=5 // pred_fallthru
        _
      %p1263 = scmp.le.s32.totalorder 2, %s14
      // Predicated region
      $region45: #{tpu_custom_call.1} parent=5 // pred_check
        %p1264 = pneg %p1263
      $region46: #{tpu_custom_call.1} parent=5 // pred_check_branch
        %1266 = sbr.rel (%p1264) target = $region48
      $region47: #{tpu_custom_call.1} parent=5 // pred_region
        %s1267 = ssub.s32 %s14, 2
        // Predicated region
        $region49: #{tpu_custom_call.1} parent=47 // pred_check
          %p1268 = pneg %p137
        $region50: #{tpu_custom_call.1} parent=47 // pred_check_branch
          %1270 = sbr.rel (%p1268) target = $region52
        $region51: #{tpu_custom_call.1} parent=47 // pred_region
          %s1271 = sand.u32 %s122, 1
          %s1272 = scalar_lea.sflag [#allocation3], %s1271
          %s1273 = sand.u32 %s122, 1
          %s1274 = smul.addr %s1273, 8
          %s1275 = scalar_lea.vmem [#allocation5], %s1274
          %1276 = dma.done %s1272, 128
        $region52: #{tpu_custom_call.1} parent=47 // pred_fallthru
          _
      $region48: #{tpu_custom_call.1} parent=5 // pred_fallthru
        _
    $region6: #{tpu_custom_call.1} parent=1 // loop_footer
      %s18 = sadd.s32 1, %s14
    $region7: #{tpu_custom_call.1} parent=1 // loop_footer_branch
      %13 = sbr.rel target = $region3
    $region8: #{tpu_custom_call.1} parent=1 // loop_exit
      _
    %1277 = vsyncpa [#allocation3], 1
    %s1278 = scalar_lea.sflag [#allocation3], 1
    %1279 = vsyncpa %s1278, 1
    %1280 = vsyncpa [#allocation4], 1
    %s1281 = scalar_lea.sflag [#allocation4], 1
    %1282 = vsyncpa %s1281, 1

</llo_original>
